<compile_context>
chip_gen: v5e
topology: v5e:2x2
jax: 0.10.0
libtpu: 0.0.40
codegen_flags: <defaults>
</compile_context>

<pallas_src>
import functools

import jax
import jax.numpy as jnp
from jax import lax
from jax.experimental import pallas as pl
from jax.experimental.pallas import tpu as pltpu

_NUM_CORE_SPLITS = 2  # v7x has 2 TensorCores; harmless (serial) on v5e/v6e.


def _policy_loss_kernel(action_ref, reward_ref, out_ref, *,
                        mobile_num, batch, tile_b, steps_per_core, beta):
    c = pl.program_id(0)   # core-split index  ("parallel")
    j = pl.program_id(1)   # per-core reduction step ("arbitrary")

    @pl.when(j == 0)
    def _():
        out_ref[...] = jnp.zeros_like(out_ref)

    act = action_ref[...]                                   # (tile_b, adim)
    if not jnp.issubdtype(act.dtype, jnp.floating):
        act = act.astype(jnp.float32)
    adim = act.shape[1]
    w = adim - 3                                            # 4-wide window count

    # Group-of-4 max via overlapping static lane slices:
    #   m[:, l] = max(act[:, l], act[:, l+1], act[:, l+2], act[:, l+3])
    # Only the group-start lanes l = 4*g are consumed below.
    m = jnp.maximum(jnp.maximum(act[:, 0:w], act[:, 1:w + 1]),
                    jnp.maximum(act[:, 2:w + 2], act[:, 3:w + 3]))
    m = m.astype(jnp.float32)                               # (tile_b, adim-3)

    lane = lax.broadcasted_iota(jnp.int32, m.shape, 1)
    group_start = (lane % 4 == 0) & (lane < 4 * mobile_num)
    gsum = jnp.sum(jnp.where(group_start, m, 0.0), axis=1, keepdims=True)
    a_n = gsum * (1.0 / mobile_num)                         # (tile_b, 1)

    # Tail masking (grid is padded by cdiv + the 2-way core split).
    row = lax.broadcasted_iota(jnp.int32, (tile_b, 1), 0)
    global_row = (c * steps_per_core + j) * tile_b + row
    valid = global_row < batch

    a_n = jnp.where(valid, a_n, 1.0)                        # log(1)*1 == 0
    log_vals = jnp.log(a_n) * a_n                           # (tile_b, 1)

    rew = reward_ref[...].astype(jnp.float32)               # (tile_b, 1)
    contrib = jnp.where(valid, log_vals * (rew + beta), 0.0)

    # Running partial sum, broadcast over this core's lane-dense output block.
    out_ref[...] = out_ref[...] + jnp.sum(contrib)


def _pick_batch_tile(bsz, adim, act_itemsize):
    """Largest multiple-of-8 row tile whose double-buffered blocks plus f32
    elementwise temporaries stay well inside v5e's 16 MiB scoped-VMEM default
    (and therefore inside v6e/v7x defaults as well)."""
    lane_cols = pl.cdiv(adim, 128) * 128                    # lane padding in VMEM
    per_row = (2 * lane_cols * act_itemsize                 # action block, double-buffered
               + 2 * 128 * 4                                # (tile_b, 1) reward block, lane-padded
               + 6 * lane_cols * 4)                         # in-kernel f32 temporaries
    budget = 10 * 1024 * 1024
    tb = min(1024, max(8, (budget // per_row) // 8 * 8))
    b_ceil = pl.cdiv(bsz, 8) * 8
    return int(min(tb, max(8, b_ceil)))


def policy_loss(q_eval, reward, action, beta=0.1, *, tile_b=None):
    del q_eval                                              # unused by the torch forward
    bsz, adim = action.shape
    mobile_num = adim // 4
    rew = reward.reshape(bsz, 1)                            # metadata-only reshape

    if tile_b is None:
        tile_b = _pick_batch_tile(bsz, adim, action.dtype.itemsize)
    assert tile_b % 8 == 0

    n_blocks = pl.cdiv(bsz, tile_b)                         # batch tiles (tail is masked)
    steps_per_core = pl.cdiv(n_blocks, _NUM_CORE_SPLITS)

    def _block_idx(c, j):
        # Clamp so padding steps of the core split re-read the last valid block
        # (their rows are fully masked out inside the kernel).
        return jnp.minimum(c * steps_per_core + j, n_blocks - 1)

    kernel = functools.partial(
        _policy_loss_kernel,
        mobile_num=mobile_num, batch=bsz, tile_b=tile_b,
        steps_per_core=steps_per_core, beta=float(beta))

    partials = pl.pallas_call(
        kernel,
        out_shape=jax.ShapeDtypeStruct((_NUM_CORE_SPLITS, 8, 128), jnp.float32),
        grid=(_NUM_CORE_SPLITS, steps_per_core),
        in_specs=[
            pl.BlockSpec((tile_b, adim), lambda c, j: (_block_idx(c, j), 0)),
            pl.BlockSpec((tile_b, 1), lambda c, j: (_block_idx(c, j), 0)),
        ],
        out_specs=pl.BlockSpec((1, 8, 128), lambda c, j: (c, 0, 0)),
        compiler_params=pltpu.CompilerParams(
            dimension_semantics=("parallel", "arbitrary"),
            vmem_limit_bytes=32 * 1024 * 1024),
    )(action, rew)

    total = jnp.sum(partials[:, 0, 0])
    return jnp.abs(total) * (1.0 / bsz)


def _policy_loss_ref(q_eval, reward, action, beta=0.1):
    # Pure-JAX reference mirroring the torch code (incl. the (B,B) broadcast).
    del q_eval
    reward = reward.reshape(-1)
    bsz, adim = action.shape
    m = adim // 4
    grp = action[:, :4 * m].reshape(bsz, m, 4)
    a_n = jnp.mean(jnp.max(grp, axis=-1), axis=-1, keepdims=True)   # (B, 1)
    log = jnp.log(a_n) * a_n                                        # (B, 1)
    a_n_cse = jnp.sum(log, axis=1)                                  # (B,)
    A = a_n_cse * reward                                            # (B,)
    Bm = log * beta                                                 # (B, 1)
    return jnp.abs(jnp.mean(A + Bm))                                # (B, B) mean


if __name__ == "__main__":
    key = jax.random.PRNGKey(0)

    def _case(k, bsz, mobile_num, beta, tile_b=None, flat_reward=False):
        k1, k2, k3 = jax.random.split(k, 3)
        adim = 4 * mobile_num
        # action entries strictly positive so log(a_n) is finite (matches a
        # probability-like action encoding in the A2C code).
        action = jax.random.uniform(k1, (bsz, adim), minval=0.05, maxval=1.0,
                                    dtype=jnp.float32)
        rshape = (bsz,) if flat_reward else (bsz, 1)
        reward = jax.random.normal(k2, rshape, dtype=jnp.float32)
        q_eval = jax.random.normal(k3, (bsz, adim), dtype=jnp.float32)
        got = policy_loss(q_eval, reward, action, beta=beta, tile_b=tile_b)
        jax.block_until_ready(got)
        want = _policy_loss_ref(q_eval, reward, action, beta=beta)
        assert jnp.allclose(got, want, rtol=2e-5, atol=5e-6), \
            (bsz, mobile_num, got, want)

    k1, k2, k3 = jax.random.split(key, 3)
    _case(k1, bsz=8, mobile_num=8, beta=0.1)                     # exact single tile
    _case(k2, bsz=13, mobile_num=3, beta=0.1, flat_reward=True)  # padded tail rows
    _case(k3, bsz=70, mobile_num=5, beta=0.2, tile_b=16)         # multi-step + core split + clamp
    print("KERNEL_OK")
</pallas_src>

<mosaic_0001>
module attributes {stable_mosaic.version = 11 : i64} {
  func.func @_policy_loss_kernel(%arg0: i32, %arg1: i32, %arg2: memref<8x32xf32, #tpu.memory_space<vmem>>, %arg3: memref<8x1xf32, #tpu.memory_space<vmem>>, %arg4: memref<1x8x128xf32, #tpu.memory_space<vmem>>) attributes {dimension_semantics = [#tpu.dimension_semantics<parallel>, #tpu.dimension_semantics<arbitrary>], iteration_bounds = array<i64: 2, 1>, scalar_prefetch = 0 : i64, scratch_operands = 0 : i64, tpu.core_type = #tpu.core_type<tc>, window_params = [{transform_indices = @transform_0, window_bounds = array<i64: 8, 32>}, {transform_indices = @transform_1, window_bounds = array<i64: 8, 1>}, {transform_indices = @transform_2, window_bounds = array<i64: 1, 8, 128>}]} {
    %c0_i32 = arith.constant 0 : i32
    %0 = arith.cmpi eq, %arg1, %c0_i32 : i32
    %1 = arith.extui %0 : i1 to i32
    %c0_i32_0 = arith.constant 0 : i32
    %2 = arith.cmpi ne, %1, %c0_i32_0 : i32
    scf.if %2 {
      %cst_23 = arith.constant 0.000000e+00 : f32
      %65 = vector.broadcast %cst_23 : f32 to vector<1x8x128xf32>
      %c0_24 = arith.constant 0 : index
      %c0_25 = arith.constant 0 : index
      %c0_26 = arith.constant 0 : index
      %66 = vector.load %arg4[%c0_24, %c0_25, %c0_26] : memref<1x8x128xf32, #tpu.memory_space<vmem>>, vector<1x8x128xf32>
      tpu.vector_store %arg4[%c0_24, %c0_25, %c0_26], %65 {strides = array<i32>} : memref<1x8x128xf32, #tpu.memory_space<vmem>>, vector<1x8x128xf32>,
    } else {
    }
    %c0 = arith.constant 0 : index
    %c0_1 = arith.constant 0 : index
    %3 = vector.load %arg2[%c0, %c0_1] : memref<8x32xf32, #tpu.memory_space<vmem>>, vector<8x32xf32>
    %4 = vector.extract_strided_slice %3 {offsets = [0, 0], sizes = [8, 29], strides = [1, 1]} : vector<8x32xf32> to vector<8x29xf32>
    %5 = vector.extract_strided_slice %3 {offsets = [0, 1], sizes = [8, 29], strides = [1, 1]} : vector<8x32xf32> to vector<8x29xf32>
    %6 = arith.maximumf %4, %5 : vector<8x29xf32>
    %7 = vector.extract_strided_slice %3 {offsets = [0, 2], sizes = [8, 29], strides = [1, 1]} : vector<8x32xf32> to vector<8x29xf32>
    %8 = vector.extract_strided_slice %3 {offsets = [0, 3], sizes = [8, 29], strides = [1, 1]} : vector<8x32xf32> to vector<8x29xf32>
    %9 = arith.maximumf %7, %8 : vector<8x29xf32>
    %10 = arith.maximumf %6, %9 : vector<8x29xf32>
    %11 = tpu.iota {dimensions = array<i32: 1>} : vector<8x29xi32>
    %c4_i32 = arith.constant 4 : i32
    %c0_i32_2 = arith.constant 0 : i32
    %12 = arith.cmpi eq, %c4_i32, %c0_i32_2 : i32
    %c1_i32 = arith.constant 1 : i32
    %13 = arith.select %12, %c1_i32, %c4_i32 : i32
    %14 = vector.broadcast %13 : i32 to vector<8x29xi32>
    %15 = arith.remsi %11, %14 : vector<8x29xi32>
    %c0_i32_3 = arith.constant 0 : i32
    %16 = vector.broadcast %c0_i32_3 : i32 to vector<8x29xi32>
    %17 = arith.cmpi ne, %15, %16 : vector<8x29xi32>
    %c0_i32_4 = arith.constant 0 : i32
    %18 = vector.broadcast %c0_i32_4 : i32 to vector<8x29xi32>
    %19 = arith.cmpi slt, %15, %18 : vector<8x29xi32>
    %c0_i32_5 = arith.constant 0 : i32
    %20 = arith.cmpi slt, %13, %c0_i32_5 : i32
    %21 = vector.broadcast %20 : i1 to vector<8x29xi1>
    %22 = vector.broadcast %21 : vector<8x29xi1> to vector<8x29xi1>
    %23 = arith.xori %19, %22 : vector<8x29xi1>
    %24 = arith.andi %23, %17 : vector<8x29xi1>
    %25 = vector.broadcast %13 : i32 to vector<8x29xi32>
    %26 = arith.addi %15, %25 : vector<8x29xi32>
    %27 = arith.select %24, %26, %15 : vector<8x29xi1>, vector<8x29xi32>
    %c0_i32_6 = arith.constant 0 : i32
    %28 = vector.broadcast %c0_i32_6 : i32 to vector<8x29xi32>
    %29 = arith.cmpi eq, %27, %28 : vector<8x29xi32>
    %c32_i32 = arith.constant 32 : i32
    %30 = vector.broadcast %c32_i32 : i32 to vector<8x29xi32>
    %31 = arith.cmpi slt, %11, %30 : vector<8x29xi32>
    %32 = arith.andi %29, %31 : vector<8x29xi1>
    %cst = arith.constant 0.000000e+00 : f32
    %33 = vector.broadcast %cst : f32 to vector<8x29xf32>
    %34 = arith.select %32, %10, %33 : vector<8x29xi1>, vector<8x29xf32>
    %cst_7 = arith.constant dense<0.000000e+00> : vector<8xf32>
    %35 = vector.multi_reduction <add>, %34, %cst_7 [1] : vector<8x29xf32> to vector<8xf32>
    %36 = vector.shape_cast %35 : vector<8xf32> to vector<8x1xf32>
    %cst_8 = arith.constant 1.250000e-01 : f32
    %37 = vector.broadcast %cst_8 : f32 to vector<8x1xf32>
    %38 = arith.mulf %36, %37 : vector<8x1xf32>
    %39 = tpu.iota {dimensions = array<i32: 0>} : vector<8x1xi32>
    %c1_i32_9 = arith.constant 1 : i32
    %40 = arith.muli %arg0, %c1_i32_9 : i32
    %41 = arith.addi %40, %arg1 : i32
    %c8_i32 = arith.constant 8 : i32
    %42 = arith.muli %41, %c8_i32 : i32
    %43 = vector.broadcast %42 : i32 to vector<8x1xi32>
    %44 = arith.addi %43, %39 : vector<8x1xi32>
    %c8_i32_10 = arith.constant 8 : i32
    %45 = vector.broadcast %c8_i32_10 : i32 to vector<8x1xi32>
    %46 = arith.cmpi slt, %44, %45 : vector<8x1xi32>
    %cst_11 = arith.constant 1.000000e+00 : f32
    %47 = vector.broadcast %cst_11 : f32 to vector<8x1xf32>
    %48 = arith.select %46, %38, %47 : vector<8x1xi1>, vector<8x1xf32>
    %49 = math.log %48 : vector<8x1xf32>
    %50 = arith.mulf %49, %48 : vector<8x1xf32>
    %c0_12 = arith.constant 0 : index
    %c0_13 = arith.constant 0 : index
    %51 = vector.load %arg3[%c0_12, %c0_13] : memref<8x1xf32, #tpu.memory_space<vmem>>, vector<8x1xf32>
    %cst_14 = arith.constant 1.000000e-01 : f32
    %52 = vector.broadcast %cst_14 : f32 to vector<8x1xf32>
    %53 = arith.addf %51, %52 : vector<8x1xf32>
    %54 = arith.mulf %50, %53 : vector<8x1xf32>
    %cst_15 = arith.constant 0.000000e+00 : f32
    %55 = vector.broadcast %cst_15 : f32 to vector<8x1xf32>
    %56 = arith.select %46, %54, %55 : vector<8x1xi1>, vector<8x1xf32>
    %c0_16 = arith.constant 0 : index
    %c0_17 = arith.constant 0 : index
    %c0_18 = arith.constant 0 : index
    %57 = vector.load %arg4[%c0_16, %c0_17, %c0_18] : memref<1x8x128xf32, #tpu.memory_space<vmem>>, vector<1x8x128xf32>
    %58 = vector.shape_cast %56 : vector<8x1xf32> to vector<1x8x1xf32>
    %cst_19 = arith.constant dense<0.000000e+00> : vector<1xf32>
    %59 = vector.multi_reduction <add>, %58, %cst_19 [1, 2] : vector<1x8x1xf32> to vector<1xf32>
    %60 = vector.shape_cast %59 : vector<1xf32> to vector<1x1x1xf32>
    %61 = vector.extract %60[0, 0, 0] : f32 from vector<1x1x1xf32>
    %62 = vector.broadcast %61 : f32 to vector<1x8x128xf32>
    %63 = arith.addf %57, %62 : vector<1x8x128xf32>
    %c0_20 = arith.constant 0 : index
    %c0_21 = arith.constant 0 : index
    %c0_22 = arith.constant 0 : index
    %64 = vector.load %arg4[%c0_20, %c0_21, %c0_22] : memref<1x8x128xf32, #tpu.memory_space<vmem>>, vector<1x8x128xf32>
    tpu.vector_store %arg4[%c0_20, %c0_21, %c0_22], %63 {strides = array<i32>} : memref<1x8x128xf32, #tpu.memory_space<vmem>>, vector<1x8x128xf32>,
    return
  }
  func.func @transform_0(%arg0: i32, %arg1: i32) -> (i32, i32) {
    %c1_i32 = arith.constant 1 : i32
    %0 = arith.muli %arg0, %c1_i32 : i32
    %1 = arith.addi %0, %arg1 : i32
    %c0_i32 = arith.constant 0 : i32
    %2 = arith.minsi %1, %c0_i32 : i32
    %c0_i32_0 = arith.constant 0 : i32
    %c0_i32_1 = arith.constant 0 : i32
    return %2, %c0_i32_0 : i32, i32
  }
  func.func @transform_1(%arg0: i32, %arg1: i32) -> (i32, i32) {
    %c1_i32 = arith.constant 1 : i32
    %0 = arith.muli %arg0, %c1_i32 : i32
    %1 = arith.addi %0, %arg1 : i32
    %c0_i32 = arith.constant 0 : i32
    %2 = arith.minsi %1, %c0_i32 : i32
    %c0_i32_0 = arith.constant 0 : i32
    %c0_i32_1 = arith.constant 0 : i32
    return %2, %c0_i32_0 : i32, i32
  }
  func.func @transform_2(%arg0: i32, %arg1: i32) -> (i32, i32, i32) {
    %c0_i32 = arith.constant 0 : i32
    %c0_i32_0 = arith.constant 0 : i32
    %c0_i32_1 = arith.constant 0 : i32
    return %arg0, %c0_i32, %c0_i32_0 : i32, i32, i32
  }
}

</mosaic_0001>

<llo_original>
// kernel: tpu_custom_call.1
$region0: #{tpu_custom_call.1}
  #allocation0 [shape = 'u32[]', space=smem, size = 0x4, offset = 0x4, fixed_abs, tag = 'smem constant byte address 0x4 - core index']
  #allocation1 [shape = 'u32[72,128]{1,0:T(1,128)}', space=vmem, size = 0x9000, scoped, tag = 'internal scratch']
  %s0 = inlined_call_operand.vmem [shape: f32[8,32], index: 0, kind: input, shape index: {}]
  %s1 = inlined_call_operand.vmem [shape: f32[8,1], index: 1, kind: input, shape index: {}]
  %s2 = inlined_call_operand.hbm [shape: f32[2,8,128], index: 2, kind: output, shape index: {}]
  %s3 = sld [smem:[#allocation0]]
  $region45: #{tpu_custom_call.1} parent=0
    _
  %s5 = ssub.s32 1, %s3
  %s6 = scalar_select 0, %s5, %s3
  $region1: #{tpu_custom_call.1} parent=0
    #allocation2 [shape = 'u8[8192]{0}', space=vmem, size = 0x2000, scoped, tag = 'output window, operand 0']
    #allocation3 [shape = 's32[2]{0}', space=sflag, size = 0x8, scoped, tag = 'scoped memory for tpu_custom_call.1']
    %7 = vsyncpa [#allocation3], 0
    %s8 = scalar_lea.sflag [#allocation3], 1
    %9 = vsyncpa %s8, 0
    loop: start=0, step=1, limit=4
    $region2: #{tpu_custom_call.1} parent=1 // loop_pre_header
      _
    $region3: #{tpu_custom_call.1} parent=1 // loop_header
      %s11 = sphi 0, %s15
      %p12 = scmp.ge.s32.totalorder %s11, 4
      %s18 = sphi 0, %s30
      %s19 = sphi 0, %s26
      %s20 = sphi 0, %s18
      %s21 = sphi 0, %s19
      %s22 = sphi 0, %s20
      %s23 = sphi 0, %s21
      %s39 = sphi 0, %s41
      %s42 = sphi 0, %s39
      %s43 = sphi 0, %s42
      %s59 = sphi 0, %s43
      %s71 = sphi 0, %s73
      %s74 = sphi 0, %s71
      %s75 = sphi 0, %s74
      %s91 = sphi 0, %s75
      %s97 = sphi 0, %s99
      %s100 = sphi 0, %s97
      %s101 = sphi 0, %s100
      %s117 = sphi 0, %s101
    $region4: #{tpu_custom_call.1} parent=1 // loop_header_branch
      %14 = sbr.rel (%p12) target = $region8
    $region5: #{tpu_custom_call.1} parent=1 // loop_body
      %s16 = ssub.s32 %s11, 1
      %s17 = ssub.s32 %s11, 2
      %s24 = sadd.s32 1, %s19
      %p25 = scmp.ge.s32.totalorder %s24, 1
      %s26 = scalar_select %p25, 0, %s24
      %s27 = sadd.s32 1, %s18
      %s28 = scalar_select %p25, %s27, %s18
      %p29 = scmp.ge.s32.totalorder %s28, 2
      %s30 = scalar_select %p29, 0, %s28
      %s31 = sadd.s32 %s18, %s19
      %p32 = scmp.lt.s32.totalorder %s31, 0
      %s33 = scalar_select %p32, %s31, 0
      %s34 = sadd.s32 %s30, %s26
      %p35 = scmp.lt.s32.totalorder %s34, 0
      %s36 = scalar_select %p35, %s34, 0
      %s37 = ssub.s32 %s33, %s36
      %p38 = scmp.eq.s32.totalorder %s37, 0
      %s40 = sadd.s32 %s39, 1
      %s41 = scalar_select %p38, %s39, %s40
      %p44 = pneg %p38
      %p45 = scmp.eq.s32.totalorder %s11, 1
      %p46 = por %p44, %p45
      %p47 = scmp.ne.s32.totalorder %s39, %s42
      %p48 = scmp.eq.s32.totalorder %s11, 0
      %p49 = por %p47, %p48
      %p50 = scmp.ne.s32.totalorder %s39, %s42
      %p51 = scmp.eq.s32.totalorder %s16, 1
      %p52 = por %p50, %p51
      %p53 = scmp.ne.s32.totalorder %s42, %s43
      %p54 = scmp.eq.s32.totalorder %s16, 0
      %p55 = por %p53, %p54
      %p56 = scmp.ne.s32.totalorder %s42, %s43
      %p57 = scmp.eq.s32.totalorder %s17, 1
      %p58 = por %p56, %p57
      %p60 = scmp.ne.s32.totalorder %s43, %s59
      %p61 = scmp.eq.s32.totalorder %s17, 0
      %p62 = por %p60, %p61
      %s63 = sadd.s32 %s18, %s19
      %p64 = scmp.lt.s32.totalorder %s63, 0
      %s65 = scalar_select %p64, %s63, 0
      %s66 = sadd.s32 %s30, %s26
      %p67 = scmp.lt.s32.totalorder %s66, 0
      %s68 = scalar_select %p67, %s66, 0
      %s69 = ssub.s32 %s65, %s68
      %p70 = scmp.eq.s32.totalorder %s69, 0
      %s72 = sadd.s32 %s71, 1
      %s73 = scalar_select %p70, %s71, %s72
      %p76 = pneg %p70
      %p77 = scmp.eq.s32.totalorder %s11, 1
      %p78 = por %p76, %p77
      %p79 = scmp.ne.s32.totalorder %s71, %s74
      %p80 = scmp.eq.s32.totalorder %s11, 0
      %p81 = por %p79, %p80
      %p82 = scmp.ne.s32.totalorder %s71, %s74
      %p83 = scmp.eq.s32.totalorder %s16, 1
      %p84 = por %p82, %p83
      %p85 = scmp.ne.s32.totalorder %s74, %s75
      %p86 = scmp.eq.s32.totalorder %s16, 0
      %p87 = por %p85, %p86
      %p88 = scmp.ne.s32.totalorder %s74, %s75
      %p89 = scmp.eq.s32.totalorder %s17, 1
      %p90 = por %p88, %p89
      %p92 = scmp.ne.s32.totalorder %s75, %s91
      %p93 = scmp.eq.s32.totalorder %s17, 0
      %p94 = por %p92, %p93
      %s95 = ssub.s32 %s18, %s30
      %p96 = scmp.eq.s32.totalorder %s95, 0
      %s98 = sadd.s32 %s97, 1
      %s99 = scalar_select %p96, %s97, %s98
      %p102 = pneg %p96
      %p103 = scmp.eq.s32.totalorder %s11, 1
      %p104 = por %p102, %p103
      %p105 = scmp.ne.s32.totalorder %s97, %s100
      %p106 = scmp.eq.s32.totalorder %s11, 0
      %p107 = por %p105, %p106
      %p108 = scmp.ne.s32.totalorder %s97, %s100
      %p109 = scmp.eq.s32.totalorder %s16, 1
      %p110 = por %p108, %p109
      %p111 = scmp.ne.s32.totalorder %s100, %s101
      %p112 = scmp.eq.s32.totalorder %s16, 0
      %p113 = por %p111, %p112
      %p114 = scmp.ne.s32.totalorder %s100, %s101
      %p115 = scmp.eq.s32.totalorder %s17, 1
      %p116 = por %p114, %p115
      %p118 = scmp.ne.s32.totalorder %s101, %s117
      %p119 = scmp.eq.s32.totalorder %s17, 0
      %p120 = por %p118, %p119
      %p121 = scmp.le.s32.totalorder 1, %s11
      %p122 = scmp.lt.s32.totalorder %s11, 3
      %p123 = pnand %p121, %p122
      %p124 = pneg %p123
      // Predicated region
      $region9: #{tpu_custom_call.1} parent=5 // pred_check
        _
      $region10: #{tpu_custom_call.1} parent=5 // pred_check_branch
        %126 = sbr.rel (%p123) target = $region12
      $region11: #{tpu_custom_call.1} parent=5 // pred_region
        %s127 = ssub.s32 %s11, 1
      $region12: #{tpu_custom_call.1} parent=5 // pred_fallthru
        _
      %p128 = scmp.lt.s32.totalorder %s11, 2
      // Predicated region
      $region13: #{tpu_custom_call.1} parent=5 // pred_check
        %p129 = pneg %p128
      $region14: #{tpu_custom_call.1} parent=5 // pred_check_branch
        %131 = sbr.rel (%p129) target = $region16
      $region15: #{tpu_custom_call.1} parent=5 // pred_region
        // Predicated region
        $region17: #{tpu_custom_call.1} parent=15 // pred_check
          %p132 = pneg %p49
        $region18: #{tpu_custom_call.1} parent=15 // pred_check_branch
          %134 = sbr.rel (%p132) target = $region20
        $region19: #{tpu_custom_call.1} parent=15 // pred_region
          %s135 = sadd.s32 %s18, %s19
          %p136 = scmp.lt.s32.totalorder %s135, 0
          %s137 = scalar_select %p136, %s135, 0
          %p138 = scmp.lt.s32.totalorder %s137, 0
          %s139 = scalar_select %p138, %s137, 0
          %s140 = smul.addr %s139, 8
          %s141 = scalar_lea.vmem %s0, %s140
          %s142 = sadd.s32 %s18, %s19
          %p143 = scmp.lt.s32.totalorder %s142, 0
          %s144 = scalar_select %p143, %s142, 0
        $region20: #{tpu_custom_call.1} parent=15 // pred_fallthru
          _
        // Predicated region
        $region21: #{tpu_custom_call.1} parent=15 // pred_check
          %p145 = pneg %p81
        $region22: #{tpu_custom_call.1} parent=15 // pred_check_branch
          %147 = sbr.rel (%p145) target = $region24
        $region23: #{tpu_custom_call.1} parent=15 // pred_region
          %s148 = sadd.s32 %s18, %s19
          %p149 = scmp.lt.s32.totalorder %s148, 0
          %s150 = scalar_select %p149, %s148, 0
          %p151 = scmp.lt.s32.totalorder %s150, 0
          %s152 = scalar_select %p151, %s150, 0
          %s153 = smul.addr %s152, 8
          %s154 = scalar_lea.vmem %s1, %s153
          %s155 = sadd.s32 %s18, %s19
          %p156 = scmp.lt.s32.totalorder %s155, 0
          %s157 = scalar_select %p156, %s155, 0
        $region24: #{tpu_custom_call.1} parent=15 // pred_fallthru
          _
      $region16: #{tpu_custom_call.1} parent=5 // pred_fallthru
        _
      %p158 = scmp.le.s32.totalorder 1, %s11
      %p159 = scmp.lt.s32.totalorder %s11, 3
      %p160 = pnand %p158, %p159
      %p161 = pneg %p160
      // Predicated region
      $region25: #{tpu_custom_call.1} parent=5 // pred_check
        _
      $region26: #{tpu_custom_call.1} parent=5 // pred_check_branch
        %163 = sbr.rel (%p160) target = $region28
      $region27: #{tpu_custom_call.1} parent=5 // pred_region
        %s164 = ssub.s32 %s11, 1
        %s165 = sadd.s32 %s20, %s21
        %p166 = scmp.lt.s32.totalorder %s165, 0
        %s167 = scalar_select %p166, %s165, 0
        %p168 = scmp.lt.s32.totalorder %s167, 0
        %s169 = scalar_select %p168, %s167, 0
        %s170 = smul.addr %s169, 8
        %s171 = scalar_lea.vmem %s0, %s170
        %p172 = pneg %p55
        %p173 = pneg %p52
        %s174 = sadd.s32 %s20, %s21
        %p175 = scmp.lt.s32.totalorder %s174, 0
        %s176 = scalar_select %p175, %s174, 0
        %p177 = scmp.lt.s32.totalorder %s176, 0
        %s178 = scalar_select %p177, %s176, 0
        %s179 = smul.addr %s178, 8
        %s180 = scalar_lea.vmem %s1, %s179
        %p181 = pneg %p87
        %p182 = pneg %p84
        %p183 = pneg %p113
        %p184 = pneg %p110
        %s185 = sand.u32 %s100, 1
        %s186 = scalar_lea.sflag [#allocation3], %s185
        %s187 = sand.u32 %s100, 1
        %s188 = smul.addr %s187, 8
        %s189 = scalar_lea.vmem [#allocation2], %s188
        %s190 = sadd.s32 %s20, %s21
        %p191 = scmp.lt.s32.totalorder %s190, 0
        %s192 = scalar_select %p191, %s190, 0
        %p193 = scmp.lt.s32.totalorder %s192, 0
        %s194 = scalar_select %p193, %s192, 0
        %s195 = smul.addr %s194, 8
        %s196 = scalar_lea.vmem %s0, %s195
        %s197 = sadd.s32 %s20, %s21
        %p198 = scmp.lt.s32.totalorder %s197, 0
        %s199 = scalar_select %p198, %s197, 0
        %s200 = sadd.s32 %s20, %s21
        %p201 = scmp.lt.s32.totalorder %s200, 0
        %s202 = scalar_select %p201, %s200, 0
        %p203 = scmp.lt.s32.totalorder %s202, 0
        %s204 = scalar_select %p203, %s202, 0
        %s205 = smul.addr %s204, 8
        %s206 = scalar_lea.vmem %s1, %s205
        %s207 = sadd.s32 %s20, %s21
        %p208 = scmp.lt.s32.totalorder %s207, 0
        %s209 = scalar_select %p208, %s207, 0
        %p210 = scmp.eq.s32.totalorder %s21, 0
        // Predicated region
        $region29: #{tpu_custom_call.1} parent=27 // pred_check
          %p211 = pneg %p210
        $region30: #{tpu_custom_call.1} parent=27 // pred_check_branch
          %213 = sbr.rel (%p211) target = $region32
        $region31: #{tpu_custom_call.1} parent=27 // pred_region
          %214 = vst [vmem:[%s189] sm:$0xff] 0.0
        $region32: #{tpu_custom_call.1} parent=27 // pred_fallthru
          _
        %v215 = vld [vmem:[%s196] sm:$0xff]
        %217 = vrot.lane.b32.xlu0 %v215, 127
        %v218 = vpop.permute.xlu0 %217
        %v220 = vmax.f32 %v215, %v218
        %222 = vrot.lane.b32.xlu0 %v220, 126
        %v223 = vpop.permute.xlu0 %222
        %v225 = vmax.f32 %v220, %v223
        %v226 = vlaneseq
        %v227 = vand.u32 %v226, 127
        %vm228 = vcmp.lt.s32.totalorder %v227, 0
        %v229 = vsub.s32 0, %v227
        %v230 = vsel %vm228, %v229, %v227
        %v231 = vshrl.u32 %v230, 2
        %v232 = vand.u32 %v230, 3
        %v233 = vsub.s32 0, %v232
        %v234 = vsel %vm228, %v233, %v232
        %vm235 = vcmp.ne.s32.totalorder %v234, 0
        %vm236 = vcmp.lt.s32.totalorder %v234, 0
        %vm237 = vmand %vm236, %vm235
        %v238 = vadd.s32 %v234, 4
        %v239 = vsel %vm237, %v238, %v234
        %vm240 = vcmp.eq.s32.totalorder %v239, 0
        %vm241 = vcmp.lt.s32.totalorder %v227, 32
        %vm242 = vmand %vm240, %vm241
        %v243 = vsel %vm242, %v225, 0.0
        %vm244 = vcmask 236544
        %v245 = vsel %vm244, %v243, 0.0
        %246 = vadd.xlane.f32.xlu0 %v245
        %v247 = vpop.xlane.xlu0 %246
        %v248 = vmul.f32 %v247, 0.125
        %v249 = vlaneseq
        %v250 = vshrl.u32 %v249, 7
        %s251 = sadd.s32 %s20, %s21
        %s252 = smul.u32 %s251, 8
        %v253 = vstv %s252
        %v254 = vadd.s32 %v253, %v250
        %vm255 = vcmp.lt.s32.totalorder %v254, 8
        %v256 = vsel %vm255, %v248, 1.0
        %v257 = vlog2.pop %v256
        %v258 = vmul.f32 %v257, 0.6931472
        %v259 = vmul.f32 %v258, %v256
        %v260 = vld [vmem:[%s206] sm:$0xff]
        %v261 = vadd.f32 %v260, 0.1
        %v262 = vmul.f32 %v259, %v261
        %v263 = vsel %vm255, %v262, 0.0
        %v264 = vld [vmem:[%s189] sm:$0xff]
        %vm265 = vcmask 7168
        %v266 = vsel %vm265, %v263, 0.0
        %267 = vadd.xlane.f32.xlu0 %v266
        %v268 = vpop.xlane.xlu0 %267
        %v269 = vrot.slane %v268, 4
        %v270 = vadd.f32 %v268, %v269
        %v271 = vrot.slane %v270, 2
        %v272 = vadd.f32 %v270, %v271
        %v273 = vrot.slane %v272, 1
        %v274 = vadd.f32 %v272, %v273
        %s275 = vtos %v274
        %v276 = vstv %s275
        %v277 = vadd.f32 %v264, %v276
        %278 = vst [vmem:[%s189] sm:$0xff] %v277
        %s279 = sand.u32 %s100, 1
        %s280 = scalar_lea.sflag [#allocation3], %s279
        %s281 = sand.u32 %s100, 1
        %s282 = smul.addr %s281, 8
        %s283 = scalar_lea.vmem [#allocation2], %s282
        // Predicated region
        $region33: #{tpu_custom_call.1} parent=27 // pred_check
          %p284 = pneg %p110
        $region34: #{tpu_custom_call.1} parent=27 // pred_check_branch
          %286 = sbr.rel (%p284) target = $region36
        $region35: #{tpu_custom_call.1} parent=27 // pred_region
          %288 = vsyncadd %s280, 0
          %s289 = smul.addr %s20, 8
          %s290 = scalar_lea.hbm %s2, %s289
          %s292 = sshll.u32 %s283, 4
          %s293 = int_to_ptr.vmem [resolvable:$true] %s292
          %s294 = sshll.u32 %s290, 4
          %s295 = int_to_ptr.hbm [resolvable:$true] %s294
          %297 = dma.vmem_to_hbm [thread:$0]  %s293, 128, %s295, %s280
        $region36: #{tpu_custom_call.1} parent=27 // pred_fallthru
          _
      $region28: #{tpu_custom_call.1} parent=5 // pred_fallthru
        _
      %p298 = scmp.le.s32.totalorder 2, %s11
      // Predicated region
      $region37: #{tpu_custom_call.1} parent=5 // pred_check
        %p299 = pneg %p298
      $region38: #{tpu_custom_call.1} parent=5 // pred_check_branch
        %301 = sbr.rel (%p299) target = $region40
      $region39: #{tpu_custom_call.1} parent=5 // pred_region
        %s302 = ssub.s32 %s11, 2
        // Predicated region
        $region41: #{tpu_custom_call.1} parent=39 // pred_check
          %p303 = pneg %p116
        $region42: #{tpu_custom_call.1} parent=39 // pred_check_branch
          %305 = sbr.rel (%p303) target = $region44
        $region43: #{tpu_custom_call.1} parent=39 // pred_region
          %s306 = sand.u32 %s101, 1
          %s307 = scalar_lea.sflag [#allocation3], %s306
          %s308 = sand.u32 %s101, 1
          %s309 = smul.addr %s308, 8
          %s310 = scalar_lea.vmem [#allocation2], %s309
          %312 = dma.done %s307, 128
        $region44: #{tpu_custom_call.1} parent=39 // pred_fallthru
          _
      $region40: #{tpu_custom_call.1} parent=5 // pred_fallthru
        _
    $region6: #{tpu_custom_call.1} parent=1 // loop_footer
      %s15 = sadd.s32 1, %s11
    $region7: #{tpu_custom_call.1} parent=1 // loop_footer_branch
      %10 = sbr.rel target = $region3
    $region8: #{tpu_custom_call.1} parent=1 // loop_exit
      _
    %313 = vsyncpa [#allocation3], 1
    %s314 = scalar_lea.sflag [#allocation3], 1
    %315 = vsyncpa %s314, 1

</llo_original>
